<compile_context>
chip_gen: v7x
topology: tpu7x:2x2x1
jax: 0.10.0
libtpu: 0.0.40
codegen_flags: <defaults>
</compile_context>

<pallas_src>
import functools

import jax
import jax.numpy as jnp
from jax import lax
from jax.experimental import pallas as pl
from jax.experimental.pallas import tpu as pltpu

BN_EPS = 1e-5
LEAKY_SLOPE = 0.3


# ---------------------------------------------------------------------------
# Kernels
# ---------------------------------------------------------------------------
def _conv_stats_kernel(patches_ref, w_ref, conv_ref, sum_ref, sumsq_ref):
    """Pass 0: conv(F, m) = W(F, K) @ patches(K, m) on the MXU, plus
    per-channel sum / sum-of-squares accumulated into resident accumulator
    outputs (their block index is constant across the m grid axis)."""
    m = pl.program_id(0)

    conv = jnp.dot(w_ref[...], patches_ref[...],
                   preferred_element_type=jnp.float32)

    @pl.when(m == 0)
    def _init():
        sum_ref[...] = jnp.zeros_like(sum_ref)
        sumsq_ref[...] = jnp.zeros_like(sumsq_ref)

    # TODO(synk): E[x^2]-E[x]^2 in f32 can cancel for very large M / large
    # per-channel means; a shifted or true two-pass variance would be tighter.
    sum_ref[...] += jnp.sum(conv, axis=-1, keepdims=True)
    sumsq_ref[...] += jnp.sum(conv * conv, axis=-1, keepdims=True)

    conv_ref[...] = conv.astype(conv_ref.dtype)


def _bn_lrelu_kernel(conv_ref, sum_ref, sumsq_ref, gamma_ref, beta_ref,
                     out_ref, *, m_true, negative_slope):
    """Pass 1: read back the pass-0 conv tile (F bytes per column, not K) and
    apply the folded training-mode BN (one FMA per element) + LeakyReLU."""
    inv_m = 1.0 / m_true
    mean = sum_ref[...] * inv_m
    var = jnp.maximum(sumsq_ref[...] * inv_m - mean * mean, 0.0)
    scale = gamma_ref[...] * lax.rsqrt(var + BN_EPS)      # EUP rsqrt
    # Conv bias cancels exactly under training-mode BatchNorm -> never loaded.
    shift = beta_ref[...] - mean * scale

    y = conv_ref[...].astype(jnp.float32) * scale + shift
    # LeakyReLU(0.3): max(y, 0.3*y) is exact for 0 <= slope < 1.
    out_ref[...] = jnp.maximum(y, negative_slope * y).astype(out_ref.dtype)


def _conv_bias_lrelu_kernel(patches_ref, w_ref, bias_ref, out_ref,
                            *, negative_slope):
    """with_bn=False variant: conv + bias + LeakyReLU in a single pass."""
    conv = jnp.dot(w_ref[...], patches_ref[...],
                   preferred_element_type=jnp.float32)
    y = conv + bias_ref[...]
    out_ref[...] = jnp.maximum(y, negative_slope * y).astype(out_ref.dtype)


# ---------------------------------------------------------------------------
# Tiling helpers (generation aware)
# ---------------------------------------------------------------------------
def _round_up(x, m):
    return ((x + m - 1) // m) * m


def _vmem_capacity_bytes():
    try:
        return int(pltpu.get_tpu_info().vmem_capacity_bytes)
    except Exception:
        return 64 * 1024 * 1024          # conservative (v7x per-core VMEM)


def _vmem_limit(est_bytes, cap):
    # Need headroom for Mosaic internal scratch; cap at 0.6 * physical VMEM
    # so v7x (64 MiB per core) is never over-asked.
    lim = max(2 * est_bytes + (8 << 20), 16 << 20)
    return int(min(lim, int(0.6 * cap)))


def _pick_tile_m(M, K, F_out, patch_esz, store_esz):
    cap = _vmem_capacity_bytes()
    frac = 4 if cap >= (96 << 20) else 6     # v5e/v6e can afford bigger tiles
    budget = max(cap // frac, 2 << 20)
    budget -= 2 * F_out * K * patch_esz      # resident weight (double-buffered)
    per_col = 2 * K * patch_esz + 2 * F_out * store_esz
    t = max(budget, per_col) // per_col
    t = max(128, min(4096, (t // 128) * 128))
    return min(t, _round_up(M, 128))


# ---------------------------------------------------------------------------
# Wrapper (channel-major layout kept between layers)
# ---------------------------------------------------------------------------
def _im2col_cnhw(x_cnhw, KH, KW, stride, padding, dilation):
    """(C, N, H, W) -> (K, M) patches, K = C*KH*KW (c-major), M = N*OH*OW.
    TODO(synk): move this gather into the kernel (windowed DMA) to remove the
    KH*KW HBM-materialized intermediate."""
    C, N, H, W = x_cnhw.shape
    OH = (H + 2 * padding - dilation * (KH - 1) - 1) // stride + 1
    OW = (W + 2 * padding - dilation * (KW - 1) - 1) // stride + 1
    xp = jnp.pad(x_cnhw, ((0, 0), (0, 0), (padding, padding),
                          (padding, padding)))
    cols = []
    for kh in range(KH):
        for kw in range(KW):
            h0 = kh * dilation
            w0 = kw * dilation
            cols.append(xp[:, :, h0:h0 + stride * OH:stride,
                           w0:w0 + stride * OW:stride])      # (C, N, OH, OW)
    patches = jnp.stack(cols, axis=1)                         # (C, KHKW, N, OH, OW)
    return patches.reshape(C * KH * KW, N * OH * OW), OH, OW


def conv2d_sn_bn_lrelu_cnhw(x_cnhw, weight, bias, gamma, beta, *,
                            stride=1, padding=1, dilation=1, with_bn=True,
                            negative_slope=LEAKY_SLOPE, tile_m=None,
                            mxu_dtype=jnp.bfloat16):
    """Fused Conv2d + BatchNorm2d(train stats) + LeakyReLU.

    Input / output are channel-major (C, N, H, W) / (F, N, OH, OW) so chained
    layers need no intermediate transposes.  `mxu_dtype` controls the matmul
    operand (and conv-intermediate) storage dtype; accumulation and the
    BN/LeakyReLU epilogue are always f32.
    """
    C, N, H, W = x_cnhw.shape
    F_out, C_w, KH, KW = weight.shape
    assert C_w == C

    patches, OH, OW = _im2col_cnhw(x_cnhw.astype(jnp.float32), KH, KW,
                                   stride, padding, dilation)
    K, M = patches.shape

    patch_esz = jnp.dtype(mxu_dtype).itemsize
    store_dtype = mxu_dtype if with_bn else jnp.float32
    store_esz = jnp.dtype(store_dtype).itemsize

    if tile_m is None:
        tile_m = _pick_tile_m(M, K, F_out, patch_esz, store_esz)
    tile_m = max(128, (int(tile_m) // 128) * 128)
    M_pad = _round_up(M, tile_m)
    if M_pad != M:
        # Zero columns contribute 0 to sum and sum-of-squares; the mean /
        # variance divide by the true M, so padding is stats-safe.
        patches = jnp.pad(patches, ((0, 0), (0, M_pad - M)))
    n_mt = M_pad // tile_m

    patches = patches.astype(mxu_dtype)
    w_mat = weight.reshape(F_out, K).astype(mxu_dtype)
    cap = _vmem_capacity_bytes()

    if not with_bn:
        bias2 = bias.reshape(F_out, 1).astype(jnp.float32)
        est = (2 * K * tile_m * patch_esz + 2 * F_out * K * patch_esz
               + 2 * F_out * tile_m * 4 + 2 * F_out * 4)
        out_flat = pl.pallas_call(
            functools.partial(_conv_bias_lrelu_kernel,
                              negative_slope=float(negative_slope)),
            out_shape=jax.ShapeDtypeStruct((F_out, M_pad), jnp.float32),
            grid_spec=pltpu.PrefetchScalarGridSpec(
                num_scalar_prefetch=0,
                grid=(n_mt,),
                in_specs=[
                    pl.BlockSpec((K, tile_m), lambda m: (0, m)),
                    pl.BlockSpec((F_out, K), lambda m: (0, 0)),
                    pl.BlockSpec((F_out, 1), lambda m: (0, 0)),
                ],
                out_specs=pl.BlockSpec((F_out, tile_m), lambda m: (0, m)),
            ),
            compiler_params=pltpu.CompilerParams(
                dimension_semantics=("parallel",),
                vmem_limit_bytes=_vmem_limit(est, cap),
            ),
        )(patches, w_mat, bias2)
        return out_flat[:, :M].reshape(F_out, N, OH, OW)

    gamma2 = gamma.reshape(F_out, 1).astype(jnp.float32)
    beta2 = beta.reshape(F_out, 1).astype(jnp.float32)

    # ---- pass 0: conv + per-channel sum / sum-of-squares -------------------
    stats_est = (2 * K * tile_m * patch_esz          # patches, double-buffered
                 + 2 * F_out * K * patch_esz         # weight
                 + 2 * F_out * tile_m * store_esz    # conv out, double-buffered
                 + 4 * F_out * 4)                    # sum / sumsq
    conv_flat, ch_sum, ch_sumsq = pl.pallas_call(
        _conv_stats_kernel,
        out_shape=(jax.ShapeDtypeStruct((F_out, M_pad), store_dtype),
                   jax.ShapeDtypeStruct((F_out, 1), jnp.float32),
                   jax.ShapeDtypeStruct((F_out, 1), jnp.float32)),
        grid_spec=pltpu.PrefetchScalarGridSpec(
            num_scalar_prefetch=0,
            grid=(n_mt,),
            in_specs=[
                pl.BlockSpec((K, tile_m), lambda m: (0, m)),    # patches
                pl.BlockSpec((F_out, K), lambda m: (0, 0)),     # weight
            ],
            out_specs=[
                pl.BlockSpec((F_out, tile_m), lambda m: (0, m)),  # conv
                pl.BlockSpec((F_out, 1), lambda m: (0, 0)),       # sum (resident)
                pl.BlockSpec((F_out, 1), lambda m: (0, 0)),       # sumsq (resident)
            ],
        ),
        compiler_params=pltpu.CompilerParams(
            # Sequential m axis: sum/sumsq accumulate across tiles.
            # TODO(synk): v7x 2-TC split needs per-core partials + combine.
            dimension_semantics=("arbitrary",),
            vmem_limit_bytes=_vmem_limit(stats_est, cap),
        ),
    )(patches, w_mat)

    # ---- pass 1: folded BN (single FMA) + LeakyReLU, parallel over tiles ----
    apply_est = (2 * F_out * tile_m * store_esz + 2 * F_out * tile_m * 4
                 + 8 * F_out * 4)
    out_flat = pl.pallas_call(
        functools.partial(_bn_lrelu_kernel, m_true=float(M),
                          negative_slope=float(negative_slope)),
        out_shape=jax.ShapeDtypeStruct((F_out, M_pad), jnp.float32),
        grid_spec=pltpu.PrefetchScalarGridSpec(
            num_scalar_prefetch=0,
            grid=(n_mt,),
            in_specs=[
                pl.BlockSpec((F_out, tile_m), lambda m: (0, m)),  # conv
                pl.BlockSpec((F_out, 1), lambda m: (0, 0)),       # sum
                pl.BlockSpec((F_out, 1), lambda m: (0, 0)),       # sumsq
                pl.BlockSpec((F_out, 1), lambda m: (0, 0)),       # gamma
                pl.BlockSpec((F_out, 1), lambda m: (0, 0)),       # beta
            ],
            out_specs=pl.BlockSpec((F_out, tile_m), lambda m: (0, m)),
        ),
        compiler_params=pltpu.CompilerParams(
            dimension_semantics=("parallel",),   # megacore-shardable on v7x
            vmem_limit_bytes=_vmem_limit(apply_est, cap),
        ),
    )(conv_flat, ch_sum, ch_sumsq, gamma2, beta2)

    return out_flat[:, :M].reshape(F_out, N, OH, OW)   # == next layer's CNHW


# ---------------------------------------------------------------------------
# SN weight preprocessing (forward-time power iteration, plain-JAX glue)
# ---------------------------------------------------------------------------
def spectral_normalize(weight, key, n_power_iterations=1, eps=1e-12):
    f_out = weight.shape[0]
    w_mat = weight.reshape(f_out, -1)
    u = jax.random.normal(key, (f_out,), dtype=weight.dtype)
    u = u / (jnp.linalg.norm(u) + eps)
    v = None
    for _ in range(max(1, n_power_iterations)):
        v = w_mat.T @ u
        v = v / (jnp.linalg.norm(v) + eps)
        u = w_mat @ v
        u = u / (jnp.linalg.norm(u) + eps)
    sigma = u @ (w_mat @ v)
    return weight / sigma


# ---------------------------------------------------------------------------
# Reference (plain XLA) for correctness checking
# ---------------------------------------------------------------------------
def _reference(x, weight, bias, gamma, beta, *, stride, padding, dilation,
               with_bn, negative_slope=LEAKY_SLOPE):
    conv = lax.conv_general_dilated(
        x, weight, window_strides=(stride, stride),
        padding=[(padding, padding), (padding, padding)],
        rhs_dilation=(dilation, dilation),
        dimension_numbers=('NCHW', 'OIHW', 'NCHW'))
    conv = conv + bias.reshape(1, -1, 1, 1)
    if with_bn:
        mean = conv.mean(axis=(0, 2, 3), keepdims=True)
        var = conv.var(axis=(0, 2, 3), keepdims=True)   # biased, like BN
        conv = (conv - mean) * lax.rsqrt(var + BN_EPS) \
            * gamma.reshape(1, -1, 1, 1) + beta.reshape(1, -1, 1, 1)
    return jnp.where(conv >= 0, conv, negative_slope * conv)


if __name__ == "__main__":
    # Encoder stem of SNCarsRegularisedEncoder at a reduced spatial size:
    #   conv1_1: 3  -> 64, k=3, s=1, p=1, BN + LeakyReLU(0.3)
    #   conv1_2: 64 -> 64, k=3, s=2, p=1, BN + LeakyReLU(0.3)
    N, C, H, W = 2, 3, 16, 16
    F1, F2 = 64, 64

    key = jax.random.PRNGKey(0)
    k = jax.random.split(key, 11)

    x = jax.random.normal(k[0], (N, C, H, W), dtype=jnp.float32)

    w1 = 0.1 * jax.random.normal(k[1], (F1, C, 3, 3), dtype=jnp.float32)
    b1 = 0.1 * jax.random.normal(k[2], (F1,), dtype=jnp.float32)
    g1 = 1.0 + 0.1 * jax.random.normal(k[3], (F1,), dtype=jnp.float32)
    be1 = 0.1 * jax.random.normal(k[4], (F1,), dtype=jnp.float32)

    w2 = 0.1 * jax.random.normal(k[5], (F2, F1, 3, 3), dtype=jnp.float32)
    b2 = 0.1 * jax.random.normal(k[6], (F2,), dtype=jnp.float32)
    g2 = 1.0 + 0.1 * jax.random.normal(k[7], (F2,), dtype=jnp.float32)
    be2 = 0.1 * jax.random.normal(k[8], (F2,), dtype=jnp.float32)

    # "SN" part of SNConv2d: spectral-normalize the weights.
    w1n = spectral_normalize(w1, k[9])
    w2n = spectral_normalize(w2, k[10])

    # One-time layout change to channel-major; layers then chain without any
    # intermediate transposes (review item #8).
    x_cnhw = jnp.transpose(x, (1, 0, 2, 3))

    # Layer 1: f32 MXU path, tile_m=128 only to exercise the multi-tile stats
    # accumulation in this smoke test (production paths auto-pick >=512).
    y1 = conv2d_sn_bn_lrelu_cnhw(x_cnhw, w1n, b1, g1, be1, stride=1, padding=1,
                                 tile_m=128, mxu_dtype=jnp.float32)
    # Layer 2 (deeper, K=576 > F=64): bf16 MXU operands + readback pass 1.
    y2 = conv2d_sn_bn_lrelu_cnhw(y1, w2n, b2, g2, be2, stride=2, padding=1,
                                 mxu_dtype=jnp.bfloat16)
    y2 = jax.block_until_ready(y2)

    y1_nchw = jnp.transpose(y1, (1, 0, 2, 3))
    y2_nchw = jnp.transpose(y2, (1, 0, 2, 3))

    # Reference path (f32 throughout).
    r1 = _reference(x, w1n, b1, g1, be1, stride=1, padding=1, dilation=1,
                    with_bn=True)
    r2 = _reference(r1, w2n, b2, g2, be2, stride=2, padding=1, dilation=1,
                    with_bn=True)

    assert y1_nchw.shape == (N, F1, H, W)
    assert y2_nchw.shape == (N, F2, H // 2, W // 2)
    err1 = float(jnp.max(jnp.abs(y1_nchw - r1)))
    err2 = float(jnp.max(jnp.abs(y2_nchw - r2)))
    # Layer 1 ran fully in f32 -> tight tolerance.
    assert jnp.allclose(y1_nchw, r1, atol=1e-3, rtol=1e-3), \
        f"layer1 max err {err1}"
    # Layer 2 used bf16 matmul operands (f32 accumulate) -> looser tolerance.
    assert jnp.allclose(y2_nchw, r2, atol=5e-2, rtol=5e-2), \
        f"layer2 max err {err2}"

    print("KERNEL_OK")
</pallas_src>

<mosaic_0001>
module attributes {stable_mosaic.version = 11 : i64} {
  func.func @_conv_stats_kernel(%arg0: i32, %arg1: memref<27x128xf32, #tpu.memory_space<vmem>>, %arg2: memref<64x27xf32, #tpu.memory_space<vmem>>, %arg3: memref<64x128xf32, #tpu.memory_space<vmem>>, %arg4: memref<64x1xf32, #tpu.memory_space<vmem>>, %arg5: memref<64x1xf32, #tpu.memory_space<vmem>>) attributes {dimension_semantics = [#tpu.dimension_semantics<arbitrary>], iteration_bounds = array<i64: 4>, scalar_prefetch = 0 : i64, scratch_operands = 0 : i64, tpu.core_type = #tpu.core_type<tc>, window_params = [{transform_indices = @transform_0, window_bounds = array<i64: 27, 128>}, {pipeline_mode = #tpu.pipeline_mode<synchronous>, transform_indices = @transform_1, window_bounds = array<i64: 64, 27>}, {transform_indices = @transform_2, window_bounds = array<i64: 64, 128>}, {pipeline_mode = #tpu.pipeline_mode<synchronous>, transform_indices = @transform_3, window_bounds = array<i64: 64, 1>}, {pipeline_mode = #tpu.pipeline_mode<synchronous>, transform_indices = @transform_4, window_bounds = array<i64: 64, 1>}]} {
    %c0 = arith.constant 0 : index
    %c0_0 = arith.constant 0 : index
    %0 = vector.load %arg2[%c0, %c0_0] : memref<64x27xf32, #tpu.memory_space<vmem>>, vector<64x27xf32>
    %c0_1 = arith.constant 0 : index
    %c0_2 = arith.constant 0 : index
    %1 = vector.load %arg1[%c0_1, %c0_2] : memref<27x128xf32, #tpu.memory_space<vmem>>, vector<27x128xf32>
    %cst = arith.constant dense<0.000000e+00> : vector<64x128xf32>
    %2 = tpu.matmul %0, %1, %cst {dimension_numbers = #tpu.dot_dimension_numbers<[1], [0], [0], [1], [0, 0, 1, 1], [], []>} : vector<64x27xf32>, vector<27x128xf32>, vector<64x128xf32> -> vector<64x128xf32>
    %c0_i32 = arith.constant 0 : i32
    %3 = arith.cmpi eq, %arg0, %c0_i32 : i32
    %4 = arith.extui %3 : i1 to i32
    %c0_i32_3 = arith.constant 0 : i32
    %5 = arith.cmpi ne, %4, %c0_i32_3 : i32
    scf.if %5 {
      %cst_16 = arith.constant 0.000000e+00 : f32
      %18 = vector.broadcast %cst_16 : f32 to vector<64x1xf32>
      %c0_17 = arith.constant 0 : index
      %c0_18 = arith.constant 0 : index
      %19 = vector.load %arg4[%c0_17, %c0_18] : memref<64x1xf32, #tpu.memory_space<vmem>>, vector<64x1xf32>
      tpu.vector_store %arg4[%c0_17, %c0_18], %18 {strides = array<i32>} : memref<64x1xf32, #tpu.memory_space<vmem>>, vector<64x1xf32>,
      %cst_19 = arith.constant 0.000000e+00 : f32
      %20 = vector.broadcast %cst_19 : f32 to vector<64x1xf32>
      %c0_20 = arith.constant 0 : index
      %c0_21 = arith.constant 0 : index
      %21 = vector.load %arg5[%c0_20, %c0_21] : memref<64x1xf32, #tpu.memory_space<vmem>>, vector<64x1xf32>
      tpu.vector_store %arg5[%c0_20, %c0_21], %20 {strides = array<i32>} : memref<64x1xf32, #tpu.memory_space<vmem>>, vector<64x1xf32>,
    } else {
    }
    %c0_4 = arith.constant 0 : index
    %c0_5 = arith.constant 0 : index
    %6 = vector.load %arg4[%c0_4, %c0_5] : memref<64x1xf32, #tpu.memory_space<vmem>>, vector<64x1xf32>
    %cst_6 = arith.constant dense<0.000000e+00> : vector<64xf32>
    %7 = vector.multi_reduction <add>, %2, %cst_6 [1] : vector<64x128xf32> to vector<64xf32>
    %8 = vector.shape_cast %7 : vector<64xf32> to vector<64x1xf32>
    %9 = arith.addf %6, %8 : vector<64x1xf32>
    %c0_7 = arith.constant 0 : index
    %c0_8 = arith.constant 0 : index
    %10 = vector.load %arg4[%c0_7, %c0_8] : memref<64x1xf32, #tpu.memory_space<vmem>>, vector<64x1xf32>
    tpu.vector_store %arg4[%c0_7, %c0_8], %9 {strides = array<i32>} : memref<64x1xf32, #tpu.memory_space<vmem>>, vector<64x1xf32>,
    %c0_9 = arith.constant 0 : index
    %c0_10 = arith.constant 0 : index
    %11 = vector.load %arg5[%c0_9, %c0_10] : memref<64x1xf32, #tpu.memory_space<vmem>>, vector<64x1xf32>
    %12 = arith.mulf %2, %2 : vector<64x128xf32>
    %cst_11 = arith.constant dense<0.000000e+00> : vector<64xf32>
    %13 = vector.multi_reduction <add>, %12, %cst_11 [1] : vector<64x128xf32> to vector<64xf32>
    %14 = vector.shape_cast %13 : vector<64xf32> to vector<64x1xf32>
    %15 = arith.addf %11, %14 : vector<64x1xf32>
    %c0_12 = arith.constant 0 : index
    %c0_13 = arith.constant 0 : index
    %16 = vector.load %arg5[%c0_12, %c0_13] : memref<64x1xf32, #tpu.memory_space<vmem>>, vector<64x1xf32>
    tpu.vector_store %arg5[%c0_12, %c0_13], %15 {strides = array<i32>} : memref<64x1xf32, #tpu.memory_space<vmem>>, vector<64x1xf32>,
    %c0_14 = arith.constant 0 : index
    %c0_15 = arith.constant 0 : index
    %17 = vector.load %arg3[%c0_14, %c0_15] : memref<64x128xf32, #tpu.memory_space<vmem>>, vector<64x128xf32>
    tpu.vector_store %arg3[%c0_14, %c0_15], %2 {strides = array<i32>} : memref<64x128xf32, #tpu.memory_space<vmem>>, vector<64x128xf32>,
    return
  }
  func.func @transform_0(%arg0: i32) -> (i32, i32) {
    %c0_i32 = arith.constant 0 : i32
    %c0_i32_0 = arith.constant 0 : i32
    return %c0_i32, %arg0 : i32, i32
  }
  func.func @transform_1(%arg0: i32) -> (i32, i32) {
    %c0_i32 = arith.constant 0 : i32
    %c0_i32_0 = arith.constant 0 : i32
    %c0_i32_1 = arith.constant 0 : i32
    return %c0_i32, %c0_i32_0 : i32, i32
  }
  func.func @transform_2(%arg0: i32) -> (i32, i32) {
    %c0_i32 = arith.constant 0 : i32
    %c0_i32_0 = arith.constant 0 : i32
    return %c0_i32, %arg0 : i32, i32
  }
  func.func @transform_3(%arg0: i32) -> (i32, i32) {
    %c0_i32 = arith.constant 0 : i32
    %c0_i32_0 = arith.constant 0 : i32
    %c0_i32_1 = arith.constant 0 : i32
    return %c0_i32, %c0_i32_0 : i32, i32
  }
  func.func @transform_4(%arg0: i32) -> (i32, i32) {
    %c0_i32 = arith.constant 0 : i32
    %c0_i32_0 = arith.constant 0 : i32
    %c0_i32_1 = arith.constant 0 : i32
    return %c0_i32, %c0_i32_0 : i32, i32
  }
}

</mosaic_0001>

<llo_original>
// kernel: tpu_custom_call.1
$region0: #{tpu_custom_call.1}
  #allocation0 [shape = 'u32[]', space=smem, size = 0x4, offset = 0x4, fixed_abs, tag = 'smem constant byte address 0x4 - core index']
  #allocation1 [shape = 'u32[144,128]{1,0:T(1,128)}', space=vmem, size = 0x12000, scoped, tag = 'internal scratch']
  %s0 = inlined_call_operand.hbm [shape: f32[27,512], index: 0, kind: input, shape index: {}]
  %s1 = inlined_call_operand.vmem [shape: f32[64,27], index: 1, kind: input, shape index: {}]
  %s2 = inlined_call_operand.hbm [shape: f32[64,512], index: 2, kind: output, shape index: {0}]
  %s3 = inlined_call_operand.vmem [shape: f32[64,1], index: 3, kind: output, shape index: {1}]
  %s4 = inlined_call_operand.vmem [shape: f32[64,1], index: 4, kind: output, shape index: {2}]
  %5 = xla_tuple %s2, %s3, %s4
  %s6 = sld [smem:[#allocation0]]
  $region65: #{tpu_custom_call.1} parent=0
    _
  %s8 = ssub.s32 1, %s6
  %s9 = scalar_select 0, %s8, %s6
  $region1: #{tpu_custom_call.1} parent=0
    #allocation2 [shape = 'u8[32768]{0}', space=vmem, size = 0x8000, scoped, tag = 'input window, operand 0']
    #allocation3 [shape = 's32[2]{0}', space=sflag, size = 0x8, scoped, tag = 'scoped memory for tpu_custom_call.1']
    #allocation4 [shape = 's32[2]{0}', space=sflag, size = 0x8, scoped, tag = 'scoped memory for tpu_custom_call.1']
    #allocation5 [shape = 'u8[65536]{0}', space=vmem, size = 0x10000, scoped, tag = 'output window, operand 0']
    %10 = vsyncpa [#allocation3], 0
    %s11 = scalar_lea.sflag [#allocation3], 1
    %12 = vsyncpa %s11, 0
    %13 = vsyncpa [#allocation4], 0
    %s14 = scalar_lea.sflag [#allocation4], 1
    %15 = vsyncpa %s14, 0
    loop: start=0, step=1, limit=6
    $region2: #{tpu_custom_call.1} parent=1 // loop_pre_header
      _
    $region3: #{tpu_custom_call.1} parent=1 // loop_header
      %s17 = sphi 0, %s21
      %p18 = scmp.ge.s32.totalorder %s17, 6
      %s27 = sphi 0, %s29
      %s30 = sphi 0, %s27
      %s31 = sphi 0, %s30
      %s47 = sphi 0, %s31
      %s51 = sphi 0, %s51
      %s53 = sphi 0, %s51
      %s54 = sphi 0, %s53
      %s68 = sphi 0, %s54
      %s74 = sphi 0, %s76
      %s77 = sphi 0, %s74
      %s78 = sphi 0, %s77
      %s94 = sphi 0, %s78
      %s98 = sphi 0, %s98
      %s100 = sphi 0, %s98
      %s101 = sphi 0, %s100
      %s115 = sphi 0, %s101
      %s119 = sphi 0, %s119
      %s121 = sphi 0, %s119
      %s122 = sphi 0, %s121
      %s136 = sphi 0, %s122
    $region4: #{tpu_custom_call.1} parent=1 // loop_header_branch
      %20 = sbr.rel (%p18) target = $region8
    $region5: #{tpu_custom_call.1} parent=1 // loop_body
      %s22 = ssub.s32 %s17, 1
      %s23 = ssub.s32 %s17, 2
      %s24 = sadd.s32 %s17, 1
      %s25 = ssub.s32 %s17, %s24
      %p26 = scmp.eq.s32.totalorder %s25, 0
      %s28 = sadd.s32 %s27, 1
      %s29 = scalar_select %p26, %s27, %s28
      %p32 = pneg %p26
      %p33 = scmp.eq.s32.totalorder %s17, 3
      %p34 = por %p32, %p33
      %p35 = scmp.ne.s32.totalorder %s27, %s30
      %p36 = scmp.eq.s32.totalorder %s17, 0
      %p37 = por %p35, %p36
      %p38 = scmp.ne.s32.totalorder %s27, %s30
      %p39 = scmp.eq.s32.totalorder %s22, 3
      %p40 = por %p38, %p39
      %p41 = scmp.ne.s32.totalorder %s30, %s31
      %p42 = scmp.eq.s32.totalorder %s22, 0
      %p43 = por %p41, %p42
      %p44 = scmp.ne.s32.totalorder %s30, %s31
      %p45 = scmp.eq.s32.totalorder %s23, 3
      %p46 = por %p44, %p45
      %p48 = scmp.ne.s32.totalorder %s31, %s47
      %p49 = scmp.eq.s32.totalorder %s23, 0
      %p50 = por %p48, %p49
      %s52 = sadd.s32 %s51, 1
      %p55 = scmp.eq.s32.totalorder %s17, 3
      %p56 = scmp.ne.s32.totalorder %s51, %s53
      %p57 = scmp.eq.s32.totalorder %s17, 0
      %p58 = por %p56, %p57
      %p59 = scmp.ne.s32.totalorder %s51, %s53
      %p60 = scmp.eq.s32.totalorder %s22, 3
      %p61 = por %p59, %p60
      %p62 = scmp.ne.s32.totalorder %s53, %s54
      %p63 = scmp.eq.s32.totalorder %s22, 0
      %p64 = por %p62, %p63
      %p65 = scmp.ne.s32.totalorder %s53, %s54
      %p66 = scmp.eq.s32.totalorder %s23, 3
      %p67 = por %p65, %p66
      %p69 = scmp.ne.s32.totalorder %s54, %s68
      %p70 = scmp.eq.s32.totalorder %s23, 0
      %p71 = por %p69, %p70
      %s72 = ssub.s32 %s17, %s24
      %p73 = scmp.eq.s32.totalorder %s72, 0
      %s75 = sadd.s32 %s74, 1
      %s76 = scalar_select %p73, %s74, %s75
      %p79 = pneg %p73
      %p80 = scmp.eq.s32.totalorder %s17, 3
      %p81 = por %p79, %p80
      %p82 = scmp.ne.s32.totalorder %s74, %s77
      %p83 = scmp.eq.s32.totalorder %s17, 0
      %p84 = por %p82, %p83
      %p85 = scmp.ne.s32.totalorder %s74, %s77
      %p86 = scmp.eq.s32.totalorder %s22, 3
      %p87 = por %p85, %p86
      %p88 = scmp.ne.s32.totalorder %s77, %s78
      %p89 = scmp.eq.s32.totalorder %s22, 0
      %p90 = por %p88, %p89
      %p91 = scmp.ne.s32.totalorder %s77, %s78
      %p92 = scmp.eq.s32.totalorder %s23, 3
      %p93 = por %p91, %p92
      %p95 = scmp.ne.s32.totalorder %s78, %s94
      %p96 = scmp.eq.s32.totalorder %s23, 0
      %p97 = por %p95, %p96
      %s99 = sadd.s32 %s98, 1
      %p102 = scmp.eq.s32.totalorder %s17, 3
      %p103 = scmp.ne.s32.totalorder %s98, %s100
      %p104 = scmp.eq.s32.totalorder %s17, 0
      %p105 = por %p103, %p104
      %p106 = scmp.ne.s32.totalorder %s98, %s100
      %p107 = scmp.eq.s32.totalorder %s22, 3
      %p108 = por %p106, %p107
      %p109 = scmp.ne.s32.totalorder %s100, %s101
      %p110 = scmp.eq.s32.totalorder %s22, 0
      %p111 = por %p109, %p110
      %p112 = scmp.ne.s32.totalorder %s100, %s101
      %p113 = scmp.eq.s32.totalorder %s23, 3
      %p114 = por %p112, %p113
      %p116 = scmp.ne.s32.totalorder %s101, %s115
      %p117 = scmp.eq.s32.totalorder %s23, 0
      %p118 = por %p116, %p117
      %s120 = sadd.s32 %s119, 1
      %p123 = scmp.eq.s32.totalorder %s17, 3
      %p124 = scmp.ne.s32.totalorder %s119, %s121
      %p125 = scmp.eq.s32.totalorder %s17, 0
      %p126 = por %p124, %p125
      %p127 = scmp.ne.s32.totalorder %s119, %s121
      %p128 = scmp.eq.s32.totalorder %s22, 3
      %p129 = por %p127, %p128
      %p130 = scmp.ne.s32.totalorder %s121, %s122
      %p131 = scmp.eq.s32.totalorder %s22, 0
      %p132 = por %p130, %p131
      %p133 = scmp.ne.s32.totalorder %s121, %s122
      %p134 = scmp.eq.s32.totalorder %s23, 3
      %p135 = por %p133, %p134
      %p137 = scmp.ne.s32.totalorder %s122, %s136
      %p138 = scmp.eq.s32.totalorder %s23, 0
      %p139 = por %p137, %p138
      %p140 = scmp.le.s32.totalorder 1, %s17
      %p141 = scmp.lt.s32.totalorder %s17, 5
      %p142 = pnand %p140, %p141
      %p143 = pneg %p142
      // Predicated region
      $region9: #{tpu_custom_call.1} parent=5 // pred_check
        _
      $region10: #{tpu_custom_call.1} parent=5 // pred_check_branch
        %145 = sbr.rel (%p142) target = $region12
      $region11: #{tpu_custom_call.1} parent=5 // pred_region
        %s146 = ssub.s32 %s17, 1
        // Predicated region
        $region13: #{tpu_custom_call.1} parent=11 // pred_check
          %p147 = pneg %p64
        $region14: #{tpu_custom_call.1} parent=11 // pred_check_branch
          %149 = sbr.rel (%p147) target = $region16
        $region15: #{tpu_custom_call.1} parent=11 // pred_region
          _
        $region16: #{tpu_custom_call.1} parent=11 // pred_fallthru
          _
      $region12: #{tpu_custom_call.1} parent=5 // pred_fallthru
        _
      %p150 = scmp.lt.s32.totalorder %s17, 4
      // Predicated region
      $region17: #{tpu_custom_call.1} parent=5 // pred_check
        %p151 = pneg %p150
      $region18: #{tpu_custom_call.1} parent=5 // pred_check_branch
        %153 = sbr.rel (%p151) target = $region20
      $region19: #{tpu_custom_call.1} parent=5 // pred_region
        // Predicated region
        $region21: #{tpu_custom_call.1} parent=19 // pred_check
          %p154 = pneg %p37
        $region22: #{tpu_custom_call.1} parent=19 // pred_check_branch
          %156 = sbr.rel (%p154) target = $region24
        $region23: #{tpu_custom_call.1} parent=19 // pred_region
          %s157 = sand.u32 %s27, 1
          %s158 = scalar_lea.sflag [#allocation3], %s157
          %s159 = sand.u32 %s27, 1
          %s160 = smul.addr %s159, 32
          %s161 = scalar_lea.vmem [#allocation2], %s160
          %s163 = ssub.s32 512, 512
          %164 = vsyncadd %s158, %s163
          %s165 = smul.addr %s17, 128
          %s166 = scalar_lea.hbm %s0, %s165
          %s167 = sshll.u32 %s161, 4
          %s168 = int_to_ptr.vmem [resolvable:$true] %s167
          %173 = dma.hbm_to_vmem [thread:$0]  %s166, 512, %s168, %s158, 512, 128, 8
        $region24: #{tpu_custom_call.1} parent=19 // pred_fallthru
          _
      $region20: #{tpu_custom_call.1} parent=5 // pred_fallthru
        _
      %p174 = scmp.le.s32.totalorder 1, %s17
      %p175 = scmp.lt.s32.totalorder %s17, 5
      %p176 = pnand %p174, %p175
      %p177 = pneg %p176
      // Predicated region
      $region25: #{tpu_custom_call.1} parent=5 // pred_check
        _
      $region26: #{tpu_custom_call.1} parent=5 // pred_check_branch
        %179 = sbr.rel (%p176) target = $region28
      $region27: #{tpu_custom_call.1} parent=5 // pred_region
        %s180 = ssub.s32 %s17, 1
        %s181 = sand.u32 %s30, 1
        %s182 = scalar_lea.sflag [#allocation3], %s181
        %s183 = sand.u32 %s30, 1
        %s184 = smul.addr %s183, 32
        %s185 = scalar_lea.vmem [#allocation2], %s184
        // Predicated region
        $region29: #{tpu_custom_call.1} parent=27 // pred_check
          %p186 = pneg %p43
        $region30: #{tpu_custom_call.1} parent=27 // pred_check_branch
          %188 = sbr.rel (%p186) target = $region32
        $region31: #{tpu_custom_call.1} parent=27 // pred_region
          %189 = dma.done %s182, 512
        $region32: #{tpu_custom_call.1} parent=27 // pred_fallthru
          _
        %s190 = sand.u32 %s30, 1
        %s191 = scalar_lea.sflag [#allocation3], %s190
        %s192 = sand.u32 %s30, 1
        %s193 = smul.addr %s192, 32
        %s194 = scalar_lea.vmem [#allocation2], %s193
        %p195 = pneg %p43
        %p196 = pneg %p40
        %p197 = pneg %p64
        %p198 = pneg %p61
        %p199 = pneg %p90
        %p200 = pneg %p87
        %s201 = sand.u32 %s77, 1
        %s202 = scalar_lea.sflag [#allocation4], %s201
        %s203 = sand.u32 %s77, 1
        %s204 = smul.addr %s203, 64
        %s205 = scalar_lea.vmem [#allocation5], %s204
        %p206 = pneg %p111
        %p207 = pneg %p108
        %p208 = pneg %p132
        %p209 = pneg %p129
        %v210 = vld [vmem:[%s1] sm:$0xff]
        %v211 = vld [vmem:[%s1 + $0x8] sm:$0xff]
        %v212 = vld [vmem:[%s1 + $0x10] sm:$0xff]
        %v213 = vld [vmem:[%s1 + $0x18] sm:$0xff]
        %v214 = vld [vmem:[%s1 + $0x20] sm:$0xff]
        %v215 = vld [vmem:[%s1 + $0x28] sm:$0xff]
        %v216 = vld [vmem:[%s1 + $0x30] sm:$0xff]
        %v217 = vld [vmem:[%s1 + $0x38] sm:$0xff]
        %v218 = vld [vmem:[%s185] sm:$0xff]
        %v219 = vld [vmem:[%s185 + $0x8] sm:$0xff]
        %v220 = vld [vmem:[%s185 + $0x10] sm:$0xff]
        %v221 = vld [vmem:[%s185 + $0x18] sm:$0x7]
        %vm222 = vcmask 220160
        %v224 = vsel %vm222, %v210, 0
        %v227 = vsel %vm222, %v211, 0
        %v230 = vsel %vm222, %v212, 0
        %v233 = vsel %vm222, %v213, 0
        %v236 = vsel %vm222, %v214, 0
        %v239 = vsel %vm222, %v215, 0
        %v242 = vsel %vm222, %v216, 0
        %v245 = vsel %vm222, %v217, 0
        %vm247 = vcmask 1042432
        %v249 = vsel %vm247, %v221, 0
        %251 = vmatprep.subr.mxu0 0.0
        %252 = vmatpush1.msra.mxu0 %v218
        %253 = vmatprep.subr.mxu0 0.0
        %254 = vmatpush1.msra.mxu0 %v219
        %255 = vmatprep.subr.mxu0 0.0
        %256 = vmatpush1.msra.mxu0 %v220
        %257 = vmatprep.subr.mxu0 0.0
        %258 = vmatpush1.msra.mxu0 %v249
        %259 = vmatprep.subr.mxu0 0.0
        %260 = vmatpush1.msra.mxu0 0.0
        %261 = vmatprep.subr.mxu0 0.0
        %262 = vmatpush1.msra.mxu0 0.0
        %263 = vmatprep.subr.mxu0 0.0
        %264 = vmatpush1.msra.mxu0 0.0
        %265 = vmatprep.subr.mxu0 0.0
        %266 = vmatpush1.msra.mxu0 0.0
        %267 = vmatprep.subr.mxu0 0.0
        %268 = vmatpush1.msra.mxu0 0.0
        %269 = vmatprep.subr.mxu0 0.0
        %270 = vmatpush1.msra.mxu0 0.0
        %271 = vmatprep.subr.mxu0 0.0
        %272 = vmatpush1.msra.mxu0 0.0
        %273 = vmatprep.subr.mxu0 0.0
        %274 = vmatpush1.msra.mxu0 0.0
        %275 = vmatprep.subr.mxu0 0.0
        %276 = vmatpush1.msra.mxu0 0.0
        %277 = vmatprep.subr.mxu0 0.0
        %278 = vmatpush1.msra.mxu0 0.0
        %279 = vmatprep.subr.mxu0 0.0
        %280 = vmatpush1.msra.mxu0 0.0
        %281 = vmatprep.subr.mxu0 0.0
        %282 = vmatpush1.msra.mxu0 0.0
        %283 = vmatprep.subr.mxu0 0.0
        %284 = vmatpush1.msra.mxu0 0.0
        %285 = vmatprep.subr.mxu0 0.0
        %286 = vmatpush1.msra.mxu0 0.0
        %287 = vmatprep.subr.mxu0 0.0
        %288 = vmatpush1.msra.mxu0 0.0
        %289 = vmatprep.subr.mxu0 0.0
        %290 = vmatpush1.msra.mxu0 0.0
        %291 = vmatprep.subr.mxu0 0.0
        %292 = vmatpush1.msra.mxu0 0.0
        %293 = vmatprep.subr.mxu0 0.0
        %294 = vmatpush1.msra.mxu0 0.0
        %295 = vmatprep.subr.mxu0 0.0
        %296 = vmatpush1.msra.mxu0 0.0
        %297 = vmatprep.subr.mxu0 0.0
        %298 = vmatpush1.msra.mxu0 0.0
        %299 = vmatprep.subr.mxu0 0.0
        %300 = vmatpush1.msra.mxu0 0.0
        %301 = vmatprep.subr.mxu0 0.0
        %302 = vmatpush1.msra.mxu0 0.0
        %303 = vmatprep.subr.mxu0 0.0
        %304 = vmatpush1.msra.mxu0 0.0
        %305 = vmatprep.subr.mxu0 0.0
        %306 = vmatpush1.msra.mxu0 0.0
        %307 = vmatprep.subr.mxu0 0.0
        %308 = vmatpush1.msra.mxu0 0.0
        %309 = vmatprep.subr.mxu0 0.0
        %310 = vmatpush1.msra.mxu0 0.0
        %311 = vmatprep.subr.mxu0 0.0
        %312 = vmatpush1.msra.mxu0 0.0
        %313 = vmatprep.subr.mxu0 0.0
        %314 = vmatpush1.msra.mxu0 0.0
        %315 = vmatprep.mubr.f32.mxu0 0.0
        %316 = vmatmul.mubr.f32.gmra.mrb[0].mxu0 %v224
        %v317 = vpop.f32.mrb[0].mxu0
        %v318 = vadd.f32 0.0, %v317
        %v319 = vpop.f32.mrb[0].mxu0
        %320 = vmatprep.mubr.f32.mxu0 0.0
        %321 = vmatmul.mubr.f32.gmra.mrb[0].mxu0 %v227
        %v322 = vpop.f32.mrb[0].mxu0
        %v323 = vadd.f32 0.0, %v322
        %v324 = vpop.f32.mrb[0].mxu0
        %325 = vmatprep.mubr.f32.mxu0 0.0
        %326 = vmatmul.mubr.f32.gmra.mrb[0].mxu0 %v230
        %v327 = vpop.f32.mrb[0].mxu0
        %v328 = vadd.f32 0.0, %v327
        %v329 = vpop.f32.mrb[0].mxu0
        %330 = vmatprep.mubr.f32.mxu0 0.0
        %331 = vmatmul.mubr.f32.gmra.mrb[0].mxu0 %v233
        %v332 = vpop.f32.mrb[0].mxu0
        %v333 = vadd.f32 0.0, %v332
        %v334 = vpop.f32.mrb[0].mxu0
        %335 = vmatprep.mubr.f32.mxu0 0.0
        %336 = vmatmul.mubr.f32.gmra.mrb[0].mxu0 %v236
        %v337 = vpop.f32.mrb[0].mxu0
        %v338 = vadd.f32 0.0, %v337
        %v339 = vpop.f32.mrb[0].mxu0
        %340 = vmatprep.mubr.f32.mxu0 0.0
        %341 = vmatmul.mubr.f32.gmra.mrb[0].mxu0 %v239
        %v342 = vpop.f32.mrb[0].mxu0
        %v343 = vadd.f32 0.0, %v342
        %v344 = vpop.f32.mrb[0].mxu0
        %345 = vmatprep.mubr.f32.mxu0 0.0
        %346 = vmatmul.mubr.f32.gmra.mrb[0].mxu0 %v242
        %v347 = vpop.f32.mrb[0].mxu0
        %v348 = vadd.f32 0.0, %v347
        %v349 = vpop.f32.mrb[0].mxu0
        %350 = vmatprep.mubr.f32.mxu0 0.0
        %351 = vmatmul.mubr.f32.gmra.mrb[0].mxu0 %v245
        %v352 = vpop.f32.mrb[0].mxu0
        %v353 = vadd.f32 0.0, %v352
        %v354 = vpop.f32.mrb[0].mxu0
        %355 = vdwg.mxu0
        %p356 = scmp.eq.s32.totalorder %s22, 0
        // Predicated region
        $region33: #{tpu_custom_call.1} parent=27 // pred_check
          %p357 = pneg %p356
        $region34: #{tpu_custom_call.1} parent=27 // pred_check_branch
          %359 = sbr.rel (%p357) target = $region36
        $region35: #{tpu_custom_call.1} parent=27 // pred_region
          %vm360 = vcmask 7168
          %361 = vst.msk [vmem:[%s3] sm:$0xff] %vm360, 0.0
          %362 = vst.msk [vmem:[%s3 + $0x8] sm:$0xff] %vm360, 0.0
          %363 = vst.msk [vmem:[%s3 + $0x10] sm:$0xff] %vm360, 0.0
          %364 = vst.msk [vmem:[%s3 + $0x18] sm:$0xff] %vm360, 0.0
          %365 = vst.msk [vmem:[%s3 + $0x20] sm:$0xff] %vm360, 0.0
          %366 = vst.msk [vmem:[%s3 + $0x28] sm:$0xff] %vm360, 0.0
          %367 = vst.msk [vmem:[%s3 + $0x30] sm:$0xff] %vm360, 0.0
          %368 = vst.msk [vmem:[%s3 + $0x38] sm:$0xff] %vm360, 0.0
          %369 = vst.msk [vmem:[%s4] sm:$0xff] %vm360, 0.0
          %370 = vst.msk [vmem:[%s4 + $0x8] sm:$0xff] %vm360, 0.0
          %371 = vst.msk [vmem:[%s4 + $0x10] sm:$0xff] %vm360, 0.0
          %372 = vst.msk [vmem:[%s4 + $0x18] sm:$0xff] %vm360, 0.0
          %373 = vst.msk [vmem:[%s4 + $0x20] sm:$0xff] %vm360, 0.0
          %374 = vst.msk [vmem:[%s4 + $0x28] sm:$0xff] %vm360, 0.0
          %375 = vst.msk [vmem:[%s4 + $0x30] sm:$0xff] %vm360, 0.0
          %376 = vst.msk [vmem:[%s4 + $0x38] sm:$0xff] %vm360, 0.0
        $region36: #{tpu_custom_call.1} parent=27 // pred_fallthru
          _
        %v377 = vld [vmem:[%s3] sm:$0xff]
        %v378 = vld [vmem:[%s3 + $0x8] sm:$0xff]
        %v379 = vld [vmem:[%s3 + $0x10] sm:$0xff]
        %v380 = vld [vmem:[%s3 + $0x18] sm:$0xff]
        %v381 = vld [vmem:[%s3 + $0x20] sm:$0xff]
        %v382 = vld [vmem:[%s3 + $0x28] sm:$0xff]
        %v383 = vld [vmem:[%s3 + $0x30] sm:$0xff]
        %v384 = vld [vmem:[%s3 + $0x38] sm:$0xff]
        %385 = vadd.xlane.f32.xlu0 %v318
        %v386 = vpop.xlane.xlu0 %385
        %387 = vadd.xlane.f32.xlu0 %v323
        %v388 = vpop.xlane.xlu0 %387
        %389 = vadd.xlane.f32.xlu0 %v328
        %v390 = vpop.xlane.xlu0 %389
        %391 = vadd.xlane.f32.xlu0 %v333
        %v392 = vpop.xlane.xlu0 %391
        %393 = vadd.xlane.f32.xlu0 %v338
        %v394 = vpop.xlane.xlu0 %393
        %395 = vadd.xlane.f32.xlu0 %v343
        %v396 = vpop.xlane.xlu0 %395
        %397 = vadd.xlane.f32.xlu0 %v348
        %v398 = vpop.xlane.xlu0 %397
        %399 = vadd.xlane.f32.xlu0 %v353
        %v400 = vpop.xlane.xlu0 %399
        %v401 = vadd.f32 %v377, %v386
        %v402 = vadd.f32 %v378, %v388
        %v403 = vadd.f32 %v379, %v390
        %v404 = vadd.f32 %v380, %v392
        %v405 = vadd.f32 %v381, %v394
        %v406 = vadd.f32 %v382, %v396
        %v407 = vadd.f32 %v383, %v398
        %v408 = vadd.f32 %v384, %v400
        %vm409 = vcmask 7168
        %410 = vst.msk [vmem:[%s3] sm:$0xff] %vm409, %v401
        %411 = vst.msk [vmem:[%s3 + $0x8] sm:$0xff] %vm409, %v402
        %412 = vst.msk [vmem:[%s3 + $0x10] sm:$0xff] %vm409, %v403
        %413 = vst.msk [vmem:[%s3 + $0x18] sm:$0xff] %vm409, %v404
        %414 = vst.msk [vmem:[%s3 + $0x20] sm:$0xff] %vm409, %v405
        %415 = vst.msk [vmem:[%s3 + $0x28] sm:$0xff] %vm409, %v406
        %416 = vst.msk [vmem:[%s3 + $0x30] sm:$0xff] %vm409, %v407
        %417 = vst.msk [vmem:[%s3 + $0x38] sm:$0xff] %vm409, %v408
        %v418 = vld [vmem:[%s4] sm:$0xff]
        %v419 = vld [vmem:[%s4 + $0x8] sm:$0xff]
        %v420 = vld [vmem:[%s4 + $0x10] sm:$0xff]
        %v421 = vld [vmem:[%s4 + $0x18] sm:$0xff]
        %v422 = vld [vmem:[%s4 + $0x20] sm:$0xff]
        %v423 = vld [vmem:[%s4 + $0x28] sm:$0xff]
        %v424 = vld [vmem:[%s4 + $0x30] sm:$0xff]
        %v425 = vld [vmem:[%s4 + $0x38] sm:$0xff]
        %v426 = vmul.f32 %v318, %v318
        %v427 = vmul.f32 %v323, %v323
        %v428 = vmul.f32 %v328, %v328
        %v429 = vmul.f32 %v333, %v333
        %v430 = vmul.f32 %v338, %v338
        %v431 = vmul.f32 %v343, %v343
        %v432 = vmul.f32 %v348, %v348
        %v433 = vmul.f32 %v353, %v353
        %434 = vadd.xlane.f32.xlu0 %v426
        %v435 = vpop.xlane.xlu0 %434
        %436 = vadd.xlane.f32.xlu0 %v427
        %v437 = vpop.xlane.xlu0 %436
        %438 = vadd.xlane.f32.xlu0 %v428
        %v439 = vpop.xlane.xlu0 %438
        %440 = vadd.xlane.f32.xlu0 %v429
        %v441 = vpop.xlane.xlu0 %440
        %442 = vadd.xlane.f32.xlu0 %v430
        %v443 = vpop.xlane.xlu0 %442
        %444 = vadd.xlane.f32.xlu0 %v431
        %v445 = vpop.xlane.xlu0 %444
        %446 = vadd.xlane.f32.xlu0 %v432
        %v447 = vpop.xlane.xlu0 %446
        %448 = vadd.xlane.f32.xlu0 %v433
        %v449 = vpop.xlane.xlu0 %448
        %v450 = vadd.f32 %v418, %v435
        %v451 = vadd.f32 %v419, %v437
        %v452 = vadd.f32 %v420, %v439
        %v453 = vadd.f32 %v421, %v441
        %v454 = vadd.f32 %v422, %v443
        %v455 = vadd.f32 %v423, %v445
        %v456 = vadd.f32 %v424, %v447
        %v457 = vadd.f32 %v425, %v449
        %458 = vst.msk [vmem:[%s4] sm:$0xff] %vm409, %v450
        %459 = vst.msk [vmem:[%s4 + $0x8] sm:$0xff] %vm409, %v451
        %460 = vst.msk [vmem:[%s4 + $0x10] sm:$0xff] %vm409, %v452
        %461 = vst.msk [vmem:[%s4 + $0x18] sm:$0xff] %vm409, %v453
        %462 = vst.msk [vmem:[%s4 + $0x20] sm:$0xff] %vm409, %v454
        %463 = vst.msk [vmem:[%s4 + $0x28] sm:$0xff] %vm409, %v455
        %464 = vst.msk [vmem:[%s4 + $0x30] sm:$0xff] %vm409, %v456
        %465 = vst.msk [vmem:[%s4 + $0x38] sm:$0xff] %vm409, %v457
        %466 = vst [vmem:[%s205] sm:$0xff] %v318
        %467 = vst [vmem:[%s205 + $0x8] sm:$0xff] %v323
        %468 = vst [vmem:[%s205 + $0x10] sm:$0xff] %v328
        %469 = vst [vmem:[%s205 + $0x18] sm:$0xff] %v333
        %470 = vst [vmem:[%s205 + $0x20] sm:$0xff] %v338
        %471 = vst [vmem:[%s205 + $0x28] sm:$0xff] %v343
        %472 = vst [vmem:[%s205 + $0x30] sm:$0xff] %v348
        %473 = vst [vmem:[%s205 + $0x38] sm:$0xff] %v353
        %s474 = sand.u32 %s77, 1
        %s475 = scalar_lea.sflag [#allocation4], %s474
        %s476 = sand.u32 %s77, 1
        %s477 = smul.addr %s476, 64
        %s478 = scalar_lea.vmem [#allocation5], %s477
        // Predicated region
        $region37: #{tpu_custom_call.1} parent=27 // pred_check
          %p479 = pneg %p87
        $region38: #{tpu_custom_call.1} parent=27 // pred_check_branch
          %481 = sbr.rel (%p479) target = $region40
        $region39: #{tpu_custom_call.1} parent=27 // pred_region
          %s483 = ssub.s32 1024, 1024
          %484 = vsyncadd %s475, %s483
          %s485 = smul.addr %s22, 128
          %s486 = scalar_lea.hbm %s2, %s485
          %s487 = sshll.u32 %s478, 4
          %s488 = int_to_ptr.vmem [resolvable:$true] %s487
          %493 = dma.vmem_to_hbm [thread:$0]  %s488, 1024, %s486, %s475, 128, 512, 8
        $region40: #{tpu_custom_call.1} parent=27 // pred_fallthru
          _
        // Predicated region
        $region41: #{tpu_custom_call.1} parent=27 // pred_check
          %p494 = pneg %p108
        $region42: #{tpu_custom_call.1} parent=27 // pred_check_branch
          %496 = sbr.rel (%p494) target = $region44
        $region43: #{tpu_custom_call.1} parent=27 // pred_region
          _
        $region44: #{tpu_custom_call.1} parent=27 // pred_fallthru
          _
        // Predicated region
        $region45: #{tpu_custom_call.1} parent=27 // pred_check
          %p497 = pneg %p129
        $region46: #{tpu_custom_call.1} parent=27 // pred_check_branch
          %499 = sbr.rel (%p497) target = $region48
        $region47: #{tpu_custom_call.1} parent=27 // pred_region
          _
        $region48: #{tpu_custom_call.1} parent=27 // pred_fallthru
          _
        // Predicated region
        $region49: #{tpu_custom_call.1} parent=27 // pred_check
          %p500 = pneg %p108
        $region50: #{tpu_custom_call.1} parent=27 // pred_check_branch
          %502 = sbr.rel (%p500) target = $region52
        $region51: #{tpu_custom_call.1} parent=27 // pred_region
          _
        $region52: #{tpu_custom_call.1} parent=27 // pred_fallthru
          _
        // Predicated region
        $region53: #{tpu_custom_call.1} parent=27 // pred_check
          %p503 = pneg %p129
        $region54: #{tpu_custom_call.1} parent=27 // pred_check_branch
          %505 = sbr.rel (%p503) target = $region56
        $region55: #{tpu_custom_call.1} parent=27 // pred_region
          _
        $region56: #{tpu_custom_call.1} parent=27 // pred_fallthru
          _
      $region28: #{tpu_custom_call.1} parent=5 // pred_fallthru
        _
      %p506 = scmp.le.s32.totalorder 2, %s17
      // Predicated region
      $region57: #{tpu_custom_call.1} parent=5 // pred_check
        %p507 = pneg %p506
      $region58: #{tpu_custom_call.1} parent=5 // pred_check_branch
        %509 = sbr.rel (%p507) target = $region60
      $region59: #{tpu_custom_call.1} parent=5 // pred_region
        %s510 = ssub.s32 %s17, 2
        // Predicated region
        $region61: #{tpu_custom_call.1} parent=59 // pred_check
          %p511 = pneg %p93
        $region62: #{tpu_custom_call.1} parent=59 // pred_check_branch
          %513 = sbr.rel (%p511) target = $region64
        $region63: #{tpu_custom_call.1} parent=59 // pred_region
          %s514 = sand.u32 %s78, 1
          %s515 = scalar_lea.sflag [#allocation4], %s514
          %s516 = sand.u32 %s78, 1
          %s517 = smul.addr %s516, 64
          %s518 = scalar_lea.vmem [#allocation5], %s517
          %519 = dma.done %s515, 1024
        $region64: #{tpu_custom_call.1} parent=59 // pred_fallthru
          _
      $region60: #{tpu_custom_call.1} parent=5 // pred_fallthru
        _
    $region6: #{tpu_custom_call.1} parent=1 // loop_footer
      %s21 = sadd.s32 1, %s17
    $region7: #{tpu_custom_call.1} parent=1 // loop_footer_branch
      %16 = sbr.rel target = $region3
    $region8: #{tpu_custom_call.1} parent=1 // loop_exit
      _
    %520 = vsyncpa [#allocation3], 1
    %s521 = scalar_lea.sflag [#allocation3], 1
    %522 = vsyncpa %s521, 1
    %523 = vsyncpa [#allocation4], 1
    %s524 = scalar_lea.sflag [#allocation4], 1
    %525 = vsyncpa %s524, 1

</llo_original>
